<compile_context>
chip_gen: v7x
topology: tpu7x:2x2x1
jax: 0.10.0
libtpu: 0.0.40
codegen_flags: <defaults>
</compile_context>

<pallas_src>
import functools
import math

import numpy as np
import jax
import jax.numpy as jnp
from jax import lax
from jax.experimental import pallas as pl
from jax.experimental.pallas import tpu as pltpu

PAD = 128           # lane padding for every channel dimension
TILE_ROWS = 512     # row tile for dense (matmul / MLP) kernels
TILE_EDGES = 128    # edge tile for the attention/aggregation kernel
WIN = 128           # destination-window size (accumulator rows per window)


def _rup(x, m):
  return (x + m - 1) // m * m


def _padded_dim(d):
  return _rup(max(d, 1), PAD)


# ----------------------------------------------------------------------------
# Pallas kernels
# ----------------------------------------------------------------------------

def _matmul_bias_kernel(x_ref, w_ref, b_ref, o_ref, *, act):
  """y = x @ W + b (optionally fused ReLU); bf16 inputs, f32 accumulate, bf16 out."""
  y = jnp.dot(x_ref[...], w_ref[...], preferred_element_type=jnp.float32) + b_ref[...]
  if act:
    y = jnp.maximum(y, 0.0)
  o_ref[...] = y.astype(o_ref.dtype)


def _mlp2_relu_kernel(x_ref, w1_ref, b1_ref, w2_ref, b2_ref, o_ref):
  """Two-layer MLP with ReLU after each layer (var/con compress MLPs), fused."""
  f32 = jnp.float32
  h = jnp.maximum(
      jnp.dot(x_ref[...], w1_ref[...], preferred_element_type=f32) + b1_ref[...], 0.0)
  h = h.astype(jnp.bfloat16)
  o = jnp.maximum(
      jnp.dot(h, w2_ref[...], preferred_element_type=f32) + b2_ref[...], 0.0)
  o_ref[...] = o.astype(o_ref.dtype)


def _edge_mlp_kernel(e_ref, v_ref, c_ref, w5e_ref, w5v_ref, w5c_ref, b5_ref,
                     w6_ref, b6_ref, o_ref):
  """EdgeUpdater edge_mlp; concat([e, v, c]) @ W5 realized as split weights (no concat)."""
  f32 = jnp.float32
  h = (jnp.dot(e_ref[...], w5e_ref[...], preferred_element_type=f32)
       + jnp.dot(v_ref[...], w5v_ref[...], preferred_element_type=f32)
       + jnp.dot(c_ref[...], w5c_ref[...], preferred_element_type=f32)
       + b5_ref[...])
  h = jnp.maximum(h, 0.0).astype(jnp.bfloat16)
  out = jnp.dot(h, w6_ref[...], preferred_element_type=f32) + b6_ref[...]
  o_ref[...] = jnp.maximum(out, 0.0).astype(o_ref.dtype)   # layer-level ReLU fused


def _attn_aggregate_kernel(widx_ref,                                  # scalar prefetch (SMEM)
                           meta_ref, kve_ref, ef_ref, we_ref, qs_ref, dinv_ref,  # inputs
                           out_ref,                                   # windowed output (bf16)
                           m_ref, l_ref, acc_ref,                     # f32 scratch (per window)
                           *, dp):
  """TransformerConv attention + segment softmax + mean aggregation + skip + ReLU.

  Edges are sorted by destination and tile-aligned to 128-destination windows; the
  windowed qs/out/deg blocks (via widx[t] in their index_maps) keep VMEM O(WIN*dp).
  Online-softmax state (m, l, acc) is per-window scratch, reset/finalised at window
  boundaries detected from the scalar-prefetched window-index array.
  """
  f32 = jnp.float32
  bf16 = jnp.bfloat16
  t = pl.program_id(0)

  w_cur = widx_ref[t]
  is_first = jnp.logical_or(t == 0, widx_ref[jnp.maximum(t - 1, 0)] != w_cur)
  is_last = widx_ref[t + 1] != w_cur          # widx has a sentinel entry at the end

  @pl.when(is_first)
  def _init():
    m_ref[...] = jnp.full(m_ref.shape, -1e30, f32)
    l_ref[...] = jnp.zeros(l_ref.shape, f32)
    acc_ref[...] = jnp.zeros(acc_ref.shape, f32)

  meta = meta_ref[0]                           # [8, TE] int32
  dst_rel = meta[0:1, :]                       # [1, TE] destination id relative to window
  valid = meta[1:2, :]                         # [1, TE] 1 for real edges, 0 for padding

  kv = kve_ref[...]                            # [TE, 2*dp] bf16 gathered k|v of src node
  ep = jnp.dot(ef_ref[...], we_ref[...], preferred_element_type=f32)   # lin_edge, [TE, dp]
  k_e = (kv[:, :dp].astype(f32) + ep).astype(bf16)
  v_e = (kv[:, dp:].astype(f32) + ep).astype(bf16)

  q_win = qs_ref[:, :dp]                       # [WIN, dp] bf16; 1/sqrt(d) folded into Wq
  scores = lax.dot_general(q_win, k_e, (((1,), (1,)), ((), ())),
                           preferred_element_type=f32)                 # [WIN, TE]

  win, te = scores.shape
  row = lax.broadcasted_iota(jnp.int32, (win, te), 0)
  member = jnp.logical_and(row == dst_rel, valid > 0)                  # bool [WIN, TE]

  s_masked = jnp.where(member, scores, jnp.float32(-1e30))
  m_old = m_ref[...]
  m_new = jnp.maximum(m_old, jnp.max(s_masked, axis=1, keepdims=True))
  rescale = jnp.exp(m_old - m_new)                                     # <= 1, no overflow
  p = jnp.where(member, jnp.exp(s_masked - m_new), 0.0)                # mask is load-bearing

  l_ref[...] = rescale * l_ref[...] + jnp.sum(p, axis=1, keepdims=True)
  acc_ref[...] = rescale * acc_ref[...] + jnp.dot(p.astype(bf16), v_e,
                                                  preferred_element_type=f32)
  m_ref[...] = m_new

  @pl.when(is_last)
  def _finalize():
    skip = qs_ref[:, dp:].astype(f32)                                  # root skip (lin_skip)
    agg = acc_ref[...] / jnp.maximum(l_ref[...], 1e-30) * dinv_ref[...]  # exact, once/window
    out_ref[...] = jnp.maximum(agg + skip, 0.0).astype(out_ref.dtype)  # layer ReLU fused


# ----------------------------------------------------------------------------
# pallas_call wrappers
# ----------------------------------------------------------------------------

def matmul_bias(x, w, b, act=False):
  m, k = x.shape
  n = w.shape[1]
  kernel = functools.partial(_matmul_bias_kernel, act=act)
  return pl.pallas_call(
      kernel,
      grid=(m // TILE_ROWS,),
      in_specs=[
          pl.BlockSpec((TILE_ROWS, k), lambda i: (i, 0)),
          pl.BlockSpec((k, n), lambda i: (0, 0)),
          pl.BlockSpec((1, n), lambda i: (0, 0)),
      ],
      out_specs=pl.BlockSpec((TILE_ROWS, n), lambda i: (i, 0)),
      out_shape=jax.ShapeDtypeStruct((m, n), jnp.bfloat16),
      compiler_params=pltpu.CompilerParams(dimension_semantics=("parallel",)),
      cost_estimate=pl.CostEstimate(
          flops=2 * m * k * n, transcendentals=0,
          bytes_accessed=2 * (m * k + k * n + m * n) + 4 * n),
  )(x, w, b)


def mlp2_relu(x, w1, b1, w2, b2):
  m, k = x.shape
  h = w1.shape[1]
  o = w2.shape[1]
  return pl.pallas_call(
      _mlp2_relu_kernel,
      grid=(m // TILE_ROWS,),
      in_specs=[
          pl.BlockSpec((TILE_ROWS, k), lambda i: (i, 0)),
          pl.BlockSpec((k, h), lambda i: (0, 0)),
          pl.BlockSpec((1, h), lambda i: (0, 0)),
          pl.BlockSpec((h, o), lambda i: (0, 0)),
          pl.BlockSpec((1, o), lambda i: (0, 0)),
      ],
      out_specs=pl.BlockSpec((TILE_ROWS, o), lambda i: (i, 0)),
      out_shape=jax.ShapeDtypeStruct((m, o), jnp.bfloat16),
      compiler_params=pltpu.CompilerParams(dimension_semantics=("parallel",)),
      cost_estimate=pl.CostEstimate(
          flops=2 * m * (k * h + h * o), transcendentals=0,
          bytes_accessed=2 * (m * k + k * h + h * o + m * o) + 4 * (h + o)),
  )(x, w1, b1, w2, b2)


def edge_mlp(edge_rows, vhe, che, p):
  m, fe = edge_rows.shape
  h = p["W5e"].shape[1]
  o = p["W6"].shape[1]
  return pl.pallas_call(
      _edge_mlp_kernel,
      grid=(m // TILE_ROWS,),
      in_specs=[
          pl.BlockSpec((TILE_ROWS, fe), lambda i: (i, 0)),
          pl.BlockSpec((TILE_ROWS, h), lambda i: (i, 0)),
          pl.BlockSpec((TILE_ROWS, h), lambda i: (i, 0)),
          pl.BlockSpec((fe, h), lambda i: (0, 0)),
          pl.BlockSpec((h, h), lambda i: (0, 0)),
          pl.BlockSpec((h, h), lambda i: (0, 0)),
          pl.BlockSpec((1, h), lambda i: (0, 0)),
          pl.BlockSpec((h, o), lambda i: (0, 0)),
          pl.BlockSpec((1, o), lambda i: (0, 0)),
      ],
      out_specs=pl.BlockSpec((TILE_ROWS, o), lambda i: (i, 0)),
      out_shape=jax.ShapeDtypeStruct((m, o), jnp.bfloat16),
      compiler_params=pltpu.CompilerParams(dimension_semantics=("parallel",)),
      cost_estimate=pl.CostEstimate(
          flops=2 * m * (fe * h + 2 * h * h + h * o), transcendentals=0,
          bytes_accessed=2 * (m * (fe + 2 * h + o) + fe * h + 2 * h * h + h * o)),
  )(edge_rows, vhe, che, p["W5e"], p["W5v"], p["W5c"], p["b5"], p["W6"], p["b6"])


def attn_aggregate(widx, meta, kv_e, ef_e, we, qs_win, deg_inv):
  n_tiles, _, te = meta.shape
  two_dp = kv_e.shape[1]
  dp = two_dp // 2
  fe = ef_e.shape[1]
  n_rows = qs_win.shape[0]
  kernel = functools.partial(_attn_aggregate_kernel, dp=dp)
  grid_spec = pltpu.PrefetchScalarGridSpec(
      num_scalar_prefetch=1,
      grid=(n_tiles,),
      in_specs=[
          pl.BlockSpec((1, 8, te), lambda t, widx: (t, 0, 0)),        # meta (dst/valid)
          pl.BlockSpec((te, two_dp), lambda t, widx: (t, 0)),         # gathered k|v per edge
          pl.BlockSpec((te, fe), lambda t, widx: (t, 0)),             # edge features (sorted)
          pl.BlockSpec((fe, dp), lambda t, widx: (0, 0)),             # lin_edge weight
          pl.BlockSpec((WIN, two_dp), lambda t, widx: (widx[t], 0)),  # q|skip window
          pl.BlockSpec((WIN, 1), lambda t, widx: (widx[t], 0)),       # 1/in-degree window
      ],
      out_specs=pl.BlockSpec((WIN, dp), lambda t, widx: (widx[t], 0)),
      scratch_shapes=[
          pltpu.VMEM((WIN, 1), jnp.float32),     # running max m
          pltpu.VMEM((WIN, 1), jnp.float32),     # running denom l
          pltpu.VMEM((WIN, dp), jnp.float32),    # running weighted sum
      ],
  )
  flops = 2 * n_tiles * (te * fe * dp + 2 * WIN * te * dp)
  bytes_accessed = (2 * (kv_e.size + ef_e.size + we.size)
                    + 2 * n_tiles * (WIN * two_dp + WIN * dp) + 4 * n_tiles * WIN
                    + 4 * n_tiles * 8 * te)
  return pl.pallas_call(
      kernel,
      grid_spec=grid_spec,
      out_shape=jax.ShapeDtypeStruct((n_rows, dp), jnp.bfloat16),
      compiler_params=pltpu.CompilerParams(
          dimension_semantics=("arbitrary",)),     # sequential per-window accumulator
      cost_estimate=pl.CostEstimate(
          flops=flops, transcendentals=2 * n_tiles * WIN * te,
          bytes_accessed=bytes_accessed),
  )(widx, meta, kv_e, ef_e, we, qs_win, deg_inv)


# ----------------------------------------------------------------------------
# Graph preprocessing (host-side numpy, once per graph/direction, not per layer)
# ----------------------------------------------------------------------------

def build_window_schedule(dst_idx, src_idx, n_dst):
  """Sort edges by destination, split into 128-destination windows, tile-align each window.

  Every window gets at least one (possibly all-padding) tile so its output block is always
  initialised/finalised; per-destination in-degree is precomputed here (graph-static).
  """
  dst = np.asarray(jax.device_get(dst_idx)).astype(np.int64)
  src = np.asarray(jax.device_get(src_idx)).astype(np.int64)
  n_win = max(1, -(-n_dst // WIN))
  n_rows = n_win * WIN

  order = np.argsort(dst, kind="stable")
  dst_s, src_s, eid_s = dst[order], src[order], order.astype(np.int64)

  dst_rel_t, valid_t, src_t, eid_t, widx = [], [], [], [], []
  for w in range(n_win):
    lo = int(np.searchsorted(dst_s, w * WIN, side="left"))
    hi = int(np.searchsorted(dst_s, (w + 1) * WIN, side="left"))
    cnt = hi - lo
    n_tiles_w = max(1, -(-cnt // TILE_EDGES))
    pad = n_tiles_w * TILE_EDGES - cnt
    dst_rel_t.append(np.concatenate([dst_s[lo:hi] - w * WIN, np.zeros(pad, np.int64)]))
    valid_t.append(np.concatenate([np.ones(cnt, np.int64), np.zeros(pad, np.int64)]))
    src_t.append(np.concatenate([src_s[lo:hi], np.zeros(pad, np.int64)]))
    eid_t.append(np.concatenate([eid_s[lo:hi], np.zeros(pad, np.int64)]))
    widx.extend([w] * n_tiles_w)

  dst_rel = np.concatenate(dst_rel_t).reshape(-1, TILE_EDGES)
  valid = np.concatenate(valid_t).reshape(-1, TILE_EDGES)
  src_all = np.concatenate(src_t).astype(np.int32)
  eid_all = np.concatenate(eid_t).astype(np.int32)
  n_tiles = dst_rel.shape[0]

  meta = np.zeros((n_tiles, 8, TILE_EDGES), np.int32)
  meta[:, 0, :] = dst_rel
  meta[:, 1, :] = valid

  widx = np.asarray(widx + [widx[-1] + 1], np.int32)   # sentinel => last tile finalizes

  deg = np.bincount(dst, minlength=n_rows).astype(np.float32)
  deg_inv = (1.0 / np.maximum(deg, 1.0)).reshape(n_rows, 1)

  return dict(meta=jnp.asarray(meta), widx=jnp.asarray(widx),
              src=jnp.asarray(src_all), eid=jnp.asarray(eid_all),
              deg_inv=jnp.asarray(deg_inv), n_tiles=n_tiles, n_rows=n_rows)


def _pad_feat(x, n_rows):
  cols = x.shape[1]
  cols_p = _padded_dim(cols)
  return jnp.pad(x, ((0, n_rows - x.shape[0]), (0, cols_p - cols))).astype(jnp.bfloat16)


# ----------------------------------------------------------------------------
# Module-level glue
# ----------------------------------------------------------------------------

def transformer_conv(x_src, x_dst, edge_rows, sched, p):
  """TransformerConv(heads=1, edge_dim, root skip) + mean aggregation + fused ReLU."""
  kv = matmul_bias(x_src, p["Wkv"], p["bkv"])            # fused [Wk || Wv]
  qs = matmul_bias(x_dst, p["Wqs"], p["bqs"])            # fused [Wq*inv_scale || Wskip]
  qs_win = qs[:sched["n_rows"], :]
  # TODO(synk): move these O(E*D) gathers in-kernel (VMEM-resident node table / DMA gather).
  kv_e = kv[sched["src"], :]
  ef_e = edge_rows[sched["eid"], :]
  return attn_aggregate(sched["widx"], sched["meta"], kv_e, ef_e, p["We"], qs_win,
                        sched["deg_inv"])


def edge_updater(var_comb, con_comb, edge_rows, var_gidx, con_gidx, p):
  vh = mlp2_relu(var_comb, p["W1"], p["b1"], p["W2"], p["b2"])
  ch = mlp2_relu(con_comb, p["W3"], p["b3"], p["W4"], p["b4"])
  vhe = vh[var_gidx, :]                                   # TODO(synk): in-kernel gather
  che = ch[con_gidx, :]
  return edge_mlp(edge_rows, vhe, che, p)


def feature_extractor_forward(params, var_lp_f, con_lp_f, solver_state,
                              edge_lp_f_wo_ss, edge_index_var_con, dims):
  n_var = var_lp_f.shape[0]
  n_con = con_lp_f.shape[0]
  n_e = edge_lp_f_wo_ss.shape[0]
  out_var_dim, out_con_dim, out_edge_dim = dims["out_var"], dims["out_con"], dims["out_edge"]

  n_var_pad = _rup(n_var, TILE_ROWS)
  n_con_pad = _rup(n_con, TILE_ROWS)
  n_e_pad = _rup(n_e, TILE_ROWS)

  var_idx = edge_index_var_con[0].astype(jnp.int32)
  con_idx = edge_index_var_con[1].astype(jnp.int32)

  sched_con = build_window_schedule(con_idx, var_idx, n_con)   # var -> con
  sched_var = build_window_schedule(var_idx, con_idx, n_var)   # con -> var

  var_gidx = jnp.concatenate([var_idx, jnp.zeros((n_e_pad - n_e,), jnp.int32)])
  con_gidx = jnp.concatenate([con_idx, jnp.zeros((n_e_pad - n_e,), jnp.int32)])

  bf = jnp.bfloat16
  var_lp_f = var_lp_f.astype(bf)
  con_lp_f = con_lp_f.astype(bf)
  edge_lp_f_wo_ss = edge_lp_f_wo_ss.astype(bf)
  ss = jnp.stack([solver_state["lo_costs"], solver_state["hi_costs"],
                  solver_state["def_mm"]], axis=1).astype(bf)           # [E, 3]

  var_learned = jnp.zeros((n_var, 0), bf)     # takes_learned_features=False
  con_learned = jnp.zeros((n_con, 0), bf)
  edge_learned = jnp.zeros((n_e, 0), bf)

  # TODO(synk): write kernel outputs directly into persistent padded slabs
  #             (input_output_aliases) to drop these per-layer concat+pad passes.
  for lp in params["layers"]:
    var_comb = _pad_feat(jnp.concatenate([var_learned, var_lp_f], axis=1), n_var_pad)
    con_comb = _pad_feat(jnp.concatenate([con_learned, con_lp_f], axis=1), n_con_pad)
    edge_comb = _pad_feat(jnp.concatenate([edge_learned, ss, edge_lp_f_wo_ss], axis=1),
                          n_e_pad)

    # constraint update: messages var -> con
    con_new = transformer_conv(var_comb, con_comb, edge_comb, sched_con, lp["con_updater"])
    con_learned = con_new[:n_con, :out_con_dim]
    con_comb = _pad_feat(jnp.concatenate([con_learned, con_lp_f], axis=1), n_con_pad)

    # variable update: messages con -> var (edge_index flipped)
    var_new = transformer_conv(con_comb, var_comb, edge_comb, sched_var, lp["var_updater"])
    var_learned = var_new[:n_var, :out_var_dim]
    var_comb = _pad_feat(jnp.concatenate([var_learned, var_lp_f], axis=1), n_var_pad)

    # edge update
    edge_new = edge_updater(var_comb, con_comb, edge_comb, var_gidx, con_gidx,
                            lp["edge_updater"])
    edge_learned = edge_new[:n_e, :out_edge_dim]

  return (var_learned.astype(jnp.float32), con_learned.astype(jnp.float32),
          edge_learned.astype(jnp.float32))


# ----------------------------------------------------------------------------
# Parameter construction (deterministic, synthetic; zero-padded, bf16 weights / f32 biases)
# ----------------------------------------------------------------------------

def _linear_padded(key, fan_in, fan_out, bias=True):
  fin_p, fout_p = _padded_dim(fan_in), _padded_dim(fan_out)
  kw, kb = jax.random.split(key)
  s = 1.0 / math.sqrt(max(fan_in, 1))
  w = jnp.zeros((fin_p, fout_p), jnp.float32)
  w = w.at[:fan_in, :fan_out].set(
      jax.random.uniform(kw, (fan_in, fan_out), jnp.float32, -s, s))
  if not bias:
    return w, None
  b = jnp.zeros((1, fout_p), jnp.float32)
  b = b.at[:, :fan_out].set(jax.random.uniform(kb, (1, fan_out), jnp.float32, -s, s))
  return w, b


def _init_transformer_conv(key, f_src, f_dst, f_edge, d_out):
  ks = jax.random.split(key, 5)
  wk, bk = _linear_padded(ks[0], f_src, d_out)
  wq, bq = _linear_padded(ks[1], f_dst, d_out)
  wv, bv = _linear_padded(ks[2], f_src, d_out)
  we, _ = _linear_padded(ks[3], f_edge, d_out, bias=False)   # lin_edge has no bias
  ws, bs = _linear_padded(ks[4], f_dst, d_out)
  inv_scale = 1.0 / math.sqrt(float(d_out))
  wq = wq * inv_scale                                         # fold 1/sqrt(d) into q
  bq = bq * inv_scale
  bf = jnp.bfloat16
  return dict(Wkv=jnp.concatenate([wk, wv], axis=1).astype(bf),
              bkv=jnp.concatenate([bk, bv], axis=1),
              Wqs=jnp.concatenate([wq, ws], axis=1).astype(bf),
              bqs=jnp.concatenate([bq, bs], axis=1),
              We=we.astype(bf))


def _init_edge_updater(key, edge_ch, var_ch, con_ch, hidden, out_dim):
  ks = jax.random.split(key, 8)
  w1, b1 = _linear_padded(ks[0], var_ch, hidden)
  w2, b2 = _linear_padded(ks[1], hidden, hidden)
  w3, b3 = _linear_padded(ks[2], con_ch, hidden)
  w4, b4 = _linear_padded(ks[3], hidden, hidden)
  w5e, b5 = _linear_padded(ks[4], edge_ch, hidden)
  w5v, _ = _linear_padded(ks[5], hidden, hidden, bias=False)
  w5c, _ = _linear_padded(ks[6], hidden, hidden, bias=False)
  w6, b6 = _linear_padded(ks[7], hidden, out_dim)
  bf = jnp.bfloat16
  return dict(W1=w1.astype(bf), b1=b1, W2=w2.astype(bf), b2=b2,
              W3=w3.astype(bf), b3=b3, W4=w4.astype(bf), b4=b4,
              W5e=w5e.astype(bf), W5v=w5v.astype(bf), W5c=w5c.astype(bf), b5=b5,
              W6=w6.astype(bf), b6=b6)


def init_feature_extractor(key, num_var_lp_f, out_var_dim, num_con_lp_f, out_con_dim,
                           num_edge_lp_f, out_edge_dim, depth):
  # use_solver_costs=True, use_net_solver_costs=False, use_def_mm=True
  num_edge_lp_f_with_ss = num_edge_lp_f + 2 + 1
  layers = []
  keys = jax.random.split(key, depth)
  for l in range(depth):
    in_var = 0 if l == 0 else out_var_dim
    in_con = 0 if l == 0 else out_con_dim
    in_edge = 0 if l == 0 else out_edge_dim
    f_var = num_var_lp_f + in_var
    f_con = num_con_lp_f + in_con
    f_edge = num_edge_lp_f_with_ss + in_edge
    k1, k2, k3 = jax.random.split(keys[l], 3)
    con_up = _init_transformer_conv(k1, f_var, f_con, f_edge, out_con_dim)
    var_up = _init_transformer_conv(k2, out_con_dim + num_con_lp_f, f_var, f_edge, out_var_dim)
    edge_up = _init_edge_updater(k3, f_edge,
                                 out_var_dim + num_var_lp_f,
                                 out_con_dim + num_con_lp_f,
                                 out_edge_dim, out_edge_dim)
    layers.append(dict(con_updater=con_up, var_updater=var_up, edge_updater=edge_up))
  return dict(layers=layers)


# ----------------------------------------------------------------------------
# Example run
# ----------------------------------------------------------------------------

if __name__ == "__main__":
  key = jax.random.PRNGKey(0)

  num_var_lp_f, num_con_lp_f, num_edge_lp_f = 4, 4, 3
  out_var_dim = out_con_dim = out_edge_dim = 16
  depth = 2
  n_var, n_con, n_edges = 12, 10, 24

  kp, kd = jax.random.split(key)
  params = init_feature_extractor(kp, num_var_lp_f, out_var_dim, num_con_lp_f,
                                  out_con_dim, num_edge_lp_f, out_edge_dim, depth)

  ks = jax.random.split(kd, 8)
  var_lp_f = jax.random.normal(ks[0], (n_var, num_var_lp_f), jnp.float32)
  con_lp_f = jax.random.normal(ks[1], (n_con, num_con_lp_f), jnp.float32)
  edge_lp_f_wo_ss = jax.random.normal(ks[2], (n_edges, num_edge_lp_f), jnp.float32)
  solver_state = {
      "lo_costs": jax.random.normal(ks[3], (n_edges,), jnp.float32),
      "hi_costs": jax.random.normal(ks[4], (n_edges,), jnp.float32),
      "def_mm": jax.random.normal(ks[5], (n_edges,), jnp.float32),
  }
  edge_index_var_con = jnp.stack([
      jax.random.randint(ks[6], (n_edges,), 0, n_var, jnp.int32),
      jax.random.randint(ks[7], (n_edges,), 0, n_con, jnp.int32),
  ], axis=0)

  dims = dict(out_var=out_var_dim, out_con=out_con_dim, out_edge=out_edge_dim)
  var_out, con_out, edge_out = feature_extractor_forward(
      params, var_lp_f, con_lp_f, solver_state, edge_lp_f_wo_ss, edge_index_var_con, dims)

  jax.block_until_ready((var_out, con_out, edge_out))
  assert var_out.shape == (n_var, out_var_dim)
  assert con_out.shape == (n_con, out_con_dim)
  assert edge_out.shape == (n_edges, out_edge_dim)
  assert bool(jnp.all(jnp.isfinite(var_out)))
  assert bool(jnp.all(jnp.isfinite(con_out)))
  assert bool(jnp.all(jnp.isfinite(edge_out)))
  print("KERNEL_OK")
</pallas_src>

<mosaic_0001>
module attributes {stable_mosaic.version = 11 : i64} {
  func.func @_matmul_bias_kernel(%arg0: i32, %arg1: memref<512x128xbf16, #tpu.memory_space<vmem>>, %arg2: memref<128x256xbf16, #tpu.memory_space<vmem>>, %arg3: memref<1x256xf32, #tpu.memory_space<vmem>>, %arg4: memref<512x256xbf16, #tpu.memory_space<vmem>>) attributes {dimension_semantics = [#tpu.dimension_semantics<parallel>], iteration_bounds = array<i64: 1>, scalar_prefetch = 0 : i64, scratch_operands = 0 : i64, tpu.core_type = #tpu.core_type<tc>, window_params = [{transform_indices = @transform_0, window_bounds = array<i64: 512, 128>}, {pipeline_mode = #tpu.pipeline_mode<synchronous>, transform_indices = @transform_1, window_bounds = array<i64: 128, 256>}, {pipeline_mode = #tpu.pipeline_mode<synchronous>, transform_indices = @transform_2, window_bounds = array<i64: 1, 256>}, {transform_indices = @transform_3, window_bounds = array<i64: 512, 256>}]} {
    %c0 = arith.constant 0 : index
    %c0_0 = arith.constant 0 : index
    %0 = vector.load %arg1[%c0, %c0_0] : memref<512x128xbf16, #tpu.memory_space<vmem>>, vector<512x128xbf16>
    %c0_1 = arith.constant 0 : index
    %c0_2 = arith.constant 0 : index
    %1 = vector.load %arg2[%c0_1, %c0_2] : memref<128x256xbf16, #tpu.memory_space<vmem>>, vector<128x256xbf16>
    %cst = arith.constant dense<0.000000e+00> : vector<512x256xf32>
    %2 = tpu.matmul %0, %1, %cst {dimension_numbers = #tpu.dot_dimension_numbers<[1], [0], [0], [1], [0, 0, 1, 1], [], []>} : vector<512x128xbf16>, vector<128x256xbf16>, vector<512x256xf32> -> vector<512x256xf32>
    %c0_3 = arith.constant 0 : index
    %c0_4 = arith.constant 0 : index
    %3 = vector.load %arg3[%c0_3, %c0_4] : memref<1x256xf32, #tpu.memory_space<vmem>>, vector<1x256xf32>
    %4 = vector.broadcast %3 : vector<1x256xf32> to vector<512x256xf32>
    %5 = arith.addf %2, %4 : vector<512x256xf32>
    %6 = arith.truncf %5 : vector<512x256xf32> to vector<512x256xbf16>
    %c0_5 = arith.constant 0 : index
    %c0_6 = arith.constant 0 : index
    %7 = vector.load %arg4[%c0_5, %c0_6] : memref<512x256xbf16, #tpu.memory_space<vmem>>, vector<512x256xbf16>
    tpu.vector_store %arg4[%c0_5, %c0_6], %6 {strides = array<i32>} : memref<512x256xbf16, #tpu.memory_space<vmem>>, vector<512x256xbf16>,
    return
  }
  func.func @transform_0(%arg0: i32) -> (i32, i32) {
    %c0_i32 = arith.constant 0 : i32
    %c0_i32_0 = arith.constant 0 : i32
    return %arg0, %c0_i32 : i32, i32
  }
  func.func @transform_1(%arg0: i32) -> (i32, i32) {
    %c0_i32 = arith.constant 0 : i32
    %c0_i32_0 = arith.constant 0 : i32
    %c0_i32_1 = arith.constant 0 : i32
    return %c0_i32, %c0_i32_0 : i32, i32
  }
  func.func @transform_2(%arg0: i32) -> (i32, i32) {
    %c0_i32 = arith.constant 0 : i32
    %c0_i32_0 = arith.constant 0 : i32
    %c0_i32_1 = arith.constant 0 : i32
    return %c0_i32, %c0_i32_0 : i32, i32
  }
  func.func @transform_3(%arg0: i32) -> (i32, i32) {
    %c0_i32 = arith.constant 0 : i32
    %c0_i32_0 = arith.constant 0 : i32
    return %arg0, %c0_i32 : i32, i32
  }
}

</mosaic_0001>

<llo_original>
// kernel: tpu_custom_call.1
$region0: #{tpu_custom_call.1}
  #allocation0 [shape = 'u32[]', space=smem, size = 0x4, offset = 0x4, fixed_abs, tag = 'smem constant byte address 0x4 - core index']
  #allocation1 [shape = 'u32[144,128]{1,0:T(1,128)}', space=vmem, size = 0x12000, scoped, tag = 'internal scratch']
  %s0 = inlined_call_operand.hbm [shape: bf16[512,128], index: 0, kind: input, shape index: {}]
  %s1 = inlined_call_operand.hbm [shape: bf16[128,256], index: 1, kind: input, shape index: {}]
  %s2 = inlined_call_operand.vmem [shape: f32[1,256], index: 2, kind: input, shape index: {}]
  %s3 = inlined_call_operand.hbm [shape: bf16[512,256], index: 3, kind: output, shape index: {}]
  %s4 = sld [smem:[#allocation0]]
  $region30: #{tpu_custom_call.1} parent=0
    _
  %s6 = ssub.s32 1, %s4
  %s7 = scalar_select 0, %s6, %s4
  $region1: #{tpu_custom_call.1} parent=0
    #allocation2 [shape = 'u8[131072]{0}', space=vmem, size = 0x20000, scoped, tag = 'input window, operand 0, single buffered']
    #allocation3 [shape = 's32[1]{0}', space=sflag, size = 0x4, scoped, tag = 'scoped memory for tpu_custom_call.1']
    #allocation4 [shape = 's32[1]{0}', space=sflag, size = 0x4, scoped, tag = 'scoped memory for tpu_custom_call.1']
    #allocation5 [shape = 'u8[65536]{0}', space=vmem, size = 0x10000, scoped, tag = 'input window, operand 1, single buffered']
    #allocation6 [shape = 's32[1]{0}', space=sflag, size = 0x4, scoped, tag = 'scoped memory for tpu_custom_call.1']
    #allocation7 [shape = 'u8[262144]{0}', space=vmem, size = 0x40000, scoped, tag = 'output window, operand 0, single buffered']
    %8 = vsyncpa [#allocation3], 0
    %9 = vsyncpa [#allocation6], 0
    %10 = vsyncpa [#allocation4], 0
    // Predicated region
    $region2: #{tpu_custom_call.1} parent=1 // pred_check
      _
    $region3: #{tpu_custom_call.1} parent=1 // pred_check_branch
      %12 = sbr.rel (0) target = $region5
    $region4: #{tpu_custom_call.1} parent=1 // pred_region
      %s14 = ssub.s32 4096, 4096
      %15 = vsyncadd [#allocation3], %s14
      %s16 = sshll.u32 [#allocation2], 4
      %s17 = int_to_ptr.vmem [resolvable:$true] %s16
      %22 = dma.hbm_to_vmem [thread:$0]  %s0, 4096, %s17, [#allocation3], 64, 64, 4
    $region5: #{tpu_custom_call.1} parent=1 // pred_fallthru
      _
    // Predicated region
    $region6: #{tpu_custom_call.1} parent=1 // pred_check
      _
    $region7: #{tpu_custom_call.1} parent=1 // pred_check_branch
      %24 = sbr.rel (0) target = $region9
    $region8: #{tpu_custom_call.1} parent=1 // pred_region
      %s26 = ssub.s32 2048, 2048
      %27 = vsyncadd [#allocation6], %s26
      %s28 = sshll.u32 [#allocation5], 4
      %s29 = int_to_ptr.vmem [resolvable:$true] %s28
      %34 = dma.hbm_to_vmem [thread:$0]  %s1, 2048, %s29, [#allocation6], 128, 128, 8
    $region9: #{tpu_custom_call.1} parent=1 // pred_fallthru
      _
    // Predicated region
    $region10: #{tpu_custom_call.1} parent=1 // pred_check
      _
    $region11: #{tpu_custom_call.1} parent=1 // pred_check_branch
      %36 = sbr.rel (0) target = $region13
    $region12: #{tpu_custom_call.1} parent=1 // pred_region
      _
    $region13: #{tpu_custom_call.1} parent=1 // pred_fallthru
      _
    // Predicated region
    $region14: #{tpu_custom_call.1} parent=1 // pred_check
      _
    $region15: #{tpu_custom_call.1} parent=1 // pred_check_branch
      %38 = sbr.rel (0) target = $region17
    $region16: #{tpu_custom_call.1} parent=1 // pred_region
      %39 = dma.done [#allocation3], 4096
    $region17: #{tpu_custom_call.1} parent=1 // pred_fallthru
      _
    // Predicated region
    $region18: #{tpu_custom_call.1} parent=1 // pred_check
      _
    $region19: #{tpu_custom_call.1} parent=1 // pred_check_branch
      %41 = sbr.rel (0) target = $region21
    $region20: #{tpu_custom_call.1} parent=1 // pred_region
      %42 = dma.done [#allocation6], 2048
    $region21: #{tpu_custom_call.1} parent=1 // pred_fallthru
      _
    %v44 = vld [vmem:[#allocation2] sm:$0xf]
    %v45 = vld [vmem:[#allocation2 + $0x4] sm:$0xf]
    %v46 = vld [vmem:[#allocation2 + $0x8] sm:$0xf]
    %v47 = vld [vmem:[#allocation2 + $0xc] sm:$0xf]
    %v48 = vld [vmem:[#allocation2 + $0x10] sm:$0xf]
    %v49 = vld [vmem:[#allocation2 + $0x14] sm:$0xf]
    %v50 = vld [vmem:[#allocation2 + $0x18] sm:$0xf]
    %v51 = vld [vmem:[#allocation2 + $0x1c] sm:$0xf]
    %v52 = vld [vmem:[#allocation2 + $0x20] sm:$0xf]
    %v53 = vld [vmem:[#allocation2 + $0x24] sm:$0xf]
    %v54 = vld [vmem:[#allocation2 + $0x28] sm:$0xf]
    %v55 = vld [vmem:[#allocation2 + $0x2c] sm:$0xf]
    %v56 = vld [vmem:[#allocation2 + $0x30] sm:$0xf]
    %v57 = vld [vmem:[#allocation2 + $0x34] sm:$0xf]
    %v58 = vld [vmem:[#allocation2 + $0x38] sm:$0xf]
    %v59 = vld [vmem:[#allocation2 + $0x3c] sm:$0xf]
    %v60 = vld [vmem:[#allocation2 + $0x40] sm:$0xf]
    %v61 = vld [vmem:[#allocation2 + $0x44] sm:$0xf]
    %v62 = vld [vmem:[#allocation2 + $0x48] sm:$0xf]
    %v63 = vld [vmem:[#allocation2 + $0x4c] sm:$0xf]
    %v64 = vld [vmem:[#allocation2 + $0x50] sm:$0xf]
    %v65 = vld [vmem:[#allocation2 + $0x54] sm:$0xf]
    %v66 = vld [vmem:[#allocation2 + $0x58] sm:$0xf]
    %v67 = vld [vmem:[#allocation2 + $0x5c] sm:$0xf]
    %v68 = vld [vmem:[#allocation2 + $0x60] sm:$0xf]
    %v69 = vld [vmem:[#allocation2 + $0x64] sm:$0xf]
    %v70 = vld [vmem:[#allocation2 + $0x68] sm:$0xf]
    %v71 = vld [vmem:[#allocation2 + $0x6c] sm:$0xf]
    %v72 = vld [vmem:[#allocation2 + $0x70] sm:$0xf]
    %v73 = vld [vmem:[#allocation2 + $0x74] sm:$0xf]
    %v74 = vld [vmem:[#allocation2 + $0x78] sm:$0xf]
    %v75 = vld [vmem:[#allocation2 + $0x7c] sm:$0xf]
    %v76 = vld [vmem:[#allocation2 + $0x80] sm:$0xf]
    %v77 = vld [vmem:[#allocation2 + $0x84] sm:$0xf]
    %v78 = vld [vmem:[#allocation2 + $0x88] sm:$0xf]
    %v79 = vld [vmem:[#allocation2 + $0x8c] sm:$0xf]
    %v80 = vld [vmem:[#allocation2 + $0x90] sm:$0xf]
    %v81 = vld [vmem:[#allocation2 + $0x94] sm:$0xf]
    %v82 = vld [vmem:[#allocation2 + $0x98] sm:$0xf]
    %v83 = vld [vmem:[#allocation2 + $0x9c] sm:$0xf]
    %v84 = vld [vmem:[#allocation2 + $0xa0] sm:$0xf]
    %v85 = vld [vmem:[#allocation2 + $0xa4] sm:$0xf]
    %v86 = vld [vmem:[#allocation2 + $0xa8] sm:$0xf]
    %v87 = vld [vmem:[#allocation2 + $0xac] sm:$0xf]
    %v88 = vld [vmem:[#allocation2 + $0xb0] sm:$0xf]
    %v89 = vld [vmem:[#allocation2 + $0xb4] sm:$0xf]
    %v90 = vld [vmem:[#allocation2 + $0xb8] sm:$0xf]
    %v91 = vld [vmem:[#allocation2 + $0xbc] sm:$0xf]
    %v92 = vld [vmem:[#allocation2 + $0xc0] sm:$0xf]
    %v93 = vld [vmem:[#allocation2 + $0xc4] sm:$0xf]
    %v94 = vld [vmem:[#allocation2 + $0xc8] sm:$0xf]
    %v95 = vld [vmem:[#allocation2 + $0xcc] sm:$0xf]
    %v96 = vld [vmem:[#allocation2 + $0xd0] sm:$0xf]
    %v97 = vld [vmem:[#allocation2 + $0xd4] sm:$0xf]
    %v98 = vld [vmem:[#allocation2 + $0xd8] sm:$0xf]
    %v99 = vld [vmem:[#allocation2 + $0xdc] sm:$0xf]
    %v100 = vld [vmem:[#allocation2 + $0xe0] sm:$0xf]
    %v101 = vld [vmem:[#allocation2 + $0xe4] sm:$0xf]
    %v102 = vld [vmem:[#allocation2 + $0xe8] sm:$0xf]
    %v103 = vld [vmem:[#allocation2 + $0xec] sm:$0xf]
    %v104 = vld [vmem:[#allocation2 + $0xf0] sm:$0xf]
    %v105 = vld [vmem:[#allocation2 + $0xf4] sm:$0xf]
    %v106 = vld [vmem:[#allocation2 + $0xf8] sm:$0xf]
    %v107 = vld [vmem:[#allocation2 + $0xfc] sm:$0xf]
    %v108 = vld [vmem:[#allocation5] sm:$0xff]
    %v109 = vld [vmem:[#allocation5 + $0x8] sm:$0xff]
    %v110 = vld [vmem:[#allocation5 + $0x10] sm:$0xff]
    %v111 = vld [vmem:[#allocation5 + $0x18] sm:$0xff]
    %v112 = vld [vmem:[#allocation5 + $0x20] sm:$0xff]
    %v113 = vld [vmem:[#allocation5 + $0x28] sm:$0xff]
    %v114 = vld [vmem:[#allocation5 + $0x30] sm:$0xff]
    %v115 = vld [vmem:[#allocation5 + $0x38] sm:$0xff]
    %v116 = vld [vmem:[#allocation5 + $0x40] sm:$0xff]
    %v117 = vld [vmem:[#allocation5 + $0x48] sm:$0xff]
    %v118 = vld [vmem:[#allocation5 + $0x50] sm:$0xff]
    %v119 = vld [vmem:[#allocation5 + $0x58] sm:$0xff]
    %v120 = vld [vmem:[#allocation5 + $0x60] sm:$0xff]
    %v121 = vld [vmem:[#allocation5 + $0x68] sm:$0xff]
    %v122 = vld [vmem:[#allocation5 + $0x70] sm:$0xff]
    %v123 = vld [vmem:[#allocation5 + $0x78] sm:$0xff]
    %v124 = vld [vmem:[%s2] sm:$0x3]
    %v126 = vlaneseq
    %v127 = vshrl.u32 %v126, 7
    %v128 = vsub.s32 0, %v127
    %v129 = vrot.slane %v124, %v128
    %v130 = vlaneseq
    %v131 = vshrl.u32 %v130, 7
    %v132 = vsub.s32 1, %v131
    %v133 = vrot.slane %v124, %v132
    %v200 = vunpack.c.l.b16 %v44
    %v201 = vunpack.c.l.b16 %v45
    %v202 = vunpack.c.l.b16 %v46
    %v203 = vunpack.c.l.b16 %v47
    %v204 = vunpack.c.l.b16 %v48
    %v205 = vunpack.c.l.b16 %v49
    %v206 = vunpack.c.l.b16 %v50
    %v207 = vunpack.c.l.b16 %v51
    %v208 = vunpack.c.l.b16 %v52
    %v209 = vunpack.c.l.b16 %v53
    %v210 = vunpack.c.l.b16 %v54
    %v211 = vunpack.c.l.b16 %v55
    %v212 = vunpack.c.l.b16 %v56
    %v213 = vunpack.c.l.b16 %v57
    %v214 = vunpack.c.l.b16 %v58
    %v215 = vunpack.c.l.b16 %v59
    %v216 = vunpack.c.l.b16 %v60
    %v217 = vunpack.c.l.b16 %v61
    %v218 = vunpack.c.l.b16 %v62
    %v219 = vunpack.c.l.b16 %v63
    %v220 = vunpack.c.l.b16 %v64
    %v221 = vunpack.c.l.b16 %v65
    %v222 = vunpack.c.l.b16 %v66
    %v223 = vunpack.c.l.b16 %v67
    %v224 = vunpack.c.l.b16 %v68
    %v225 = vunpack.c.l.b16 %v69
    %v226 = vunpack.c.l.b16 %v70
    %v227 = vunpack.c.l.b16 %v71
    %v228 = vunpack.c.l.b16 %v72
    %v229 = vunpack.c.l.b16 %v73
    %v230 = vunpack.c.l.b16 %v74
    %v231 = vunpack.c.l.b16 %v75
    %v232 = vunpack.c.l.b16 %v76
    %v233 = vunpack.c.l.b16 %v77
    %v234 = vunpack.c.l.b16 %v78
    %v235 = vunpack.c.l.b16 %v79
    %v236 = vunpack.c.l.b16 %v80
    %v237 = vunpack.c.l.b16 %v81
    %v238 = vunpack.c.l.b16 %v82
    %v239 = vunpack.c.l.b16 %v83
    %v240 = vunpack.c.l.b16 %v84
    %v241 = vunpack.c.l.b16 %v85
    %v242 = vunpack.c.l.b16 %v86
    %v243 = vunpack.c.l.b16 %v87
    %v244 = vunpack.c.l.b16 %v88
    %v245 = vunpack.c.l.b16 %v89
    %v246 = vunpack.c.l.b16 %v90
    %v247 = vunpack.c.l.b16 %v91
    %v248 = vunpack.c.l.b16 %v92
    %v249 = vunpack.c.l.b16 %v93
    %v250 = vunpack.c.l.b16 %v94
    %v251 = vunpack.c.l.b16 %v95
    %v252 = vunpack.c.l.b16 %v96
    %v253 = vunpack.c.l.b16 %v97
    %v254 = vunpack.c.l.b16 %v98
    %v255 = vunpack.c.l.b16 %v99
    %v256 = vunpack.c.l.b16 %v100
    %v257 = vunpack.c.l.b16 %v101
    %v258 = vunpack.c.l.b16 %v102
    %v259 = vunpack.c.l.b16 %v103
    %v260 = vunpack.c.l.b16 %v104
    %v261 = vunpack.c.l.b16 %v105
    %v262 = vunpack.c.l.b16 %v106
    %v263 = vunpack.c.l.b16 %v107
    %v264 = vpack.c.b16 %v201, %v200
    %v265 = vpack.c.b16 %v203, %v202
    %v266 = vpack.c.b16 %v205, %v204
    %v267 = vpack.c.b16 %v207, %v206
    %v268 = vpack.c.b16 %v209, %v208
    %v269 = vpack.c.b16 %v211, %v210
    %v270 = vpack.c.b16 %v213, %v212
    %v271 = vpack.c.b16 %v215, %v214
    %v272 = vpack.c.b16 %v217, %v216
    %v273 = vpack.c.b16 %v219, %v218
    %v274 = vpack.c.b16 %v221, %v220
    %v275 = vpack.c.b16 %v223, %v222
    %v276 = vpack.c.b16 %v225, %v224
    %v277 = vpack.c.b16 %v227, %v226
    %v278 = vpack.c.b16 %v229, %v228
    %v279 = vpack.c.b16 %v231, %v230
    %v280 = vpack.c.b16 %v233, %v232
    %v281 = vpack.c.b16 %v235, %v234
    %v282 = vpack.c.b16 %v237, %v236
    %v283 = vpack.c.b16 %v239, %v238
    %v284 = vpack.c.b16 %v241, %v240
    %v285 = vpack.c.b16 %v243, %v242
    %v286 = vpack.c.b16 %v245, %v244
    %v287 = vpack.c.b16 %v247, %v246
    %v288 = vpack.c.b16 %v249, %v248
    %v289 = vpack.c.b16 %v251, %v250
    %v290 = vpack.c.b16 %v253, %v252
    %v291 = vpack.c.b16 %v255, %v254
    %v292 = vpack.c.b16 %v257, %v256
    %v293 = vpack.c.b16 %v259, %v258
    %v294 = vpack.c.b16 %v261, %v260
    %v295 = vpack.c.b16 %v263, %v262
    %v344 = vunpack.c.l.b16 %v108
    %v345 = vunpack.c.h.b16 %v108
    %v346 = vunpack.c.l.b16 %v109
    %v347 = vunpack.c.h.b16 %v109
    %v348 = vunpack.c.l.b16 %v110
    %v349 = vunpack.c.h.b16 %v110
    %v350 = vunpack.c.l.b16 %v111
    %v351 = vunpack.c.h.b16 %v111
    %v352 = vunpack.c.l.b16 %v112
    %v353 = vunpack.c.h.b16 %v112
    %v354 = vunpack.c.l.b16 %v113
    %v355 = vunpack.c.h.b16 %v113
    %v356 = vunpack.c.l.b16 %v114
    %v357 = vunpack.c.h.b16 %v114
    %v358 = vunpack.c.l.b16 %v115
    %v359 = vunpack.c.h.b16 %v115
    %v360 = vunpack.c.l.b16 %v116
    %v361 = vunpack.c.h.b16 %v116
    %v362 = vunpack.c.l.b16 %v117
    %v363 = vunpack.c.h.b16 %v117
    %v364 = vunpack.c.l.b16 %v118
    %v365 = vunpack.c.h.b16 %v118
    %v366 = vunpack.c.l.b16 %v119
    %v367 = vunpack.c.h.b16 %v119
    %v368 = vunpack.c.l.b16 %v120
    %v369 = vunpack.c.h.b16 %v120
    %v370 = vunpack.c.l.b16 %v121
    %v371 = vunpack.c.h.b16 %v121
    %v372 = vunpack.c.l.b16 %v122
    %v373 = vunpack.c.h.b16 %v122
    %v374 = vunpack.c.l.b16 %v123
    %v375 = vunpack.c.h.b16 %v123
    %v376 = vpack.c.b16 %v346, %v344
    %v377 = vpack.c.b16 %v347, %v345
    %v378 = vpack.c.b16 %v350, %v348
    %v379 = vpack.c.b16 %v351, %v349
    %v380 = vpack.c.b16 %v354, %v352
    %v381 = vpack.c.b16 %v355, %v353
    %v382 = vpack.c.b16 %v358, %v356
    %v383 = vpack.c.b16 %v359, %v357
    %v384 = vpack.c.b16 %v362, %v360
    %v385 = vpack.c.b16 %v363, %v361
    %v386 = vpack.c.b16 %v366, %v364
    %v387 = vpack.c.b16 %v367, %v365
    %v388 = vpack.c.b16 %v370, %v368
    %v389 = vpack.c.b16 %v371, %v369
    %v390 = vpack.c.b16 %v374, %v372
    %v391 = vpack.c.b16 %v375, %v373
    %408 = vmatprep.subr.bf16.mxu0 %v377
    %409 = vmatpush1.bf16.msra.mxu0 %v376
    %410 = vmatprep.subr.bf16.mxu0 %v379
    %411 = vmatpush1.bf16.msra.mxu0 %v378
    %412 = vmatprep.subr.bf16.mxu0 %v381
    %413 = vmatpush1.bf16.msra.mxu0 %v380
    %414 = vmatprep.subr.bf16.mxu0 %v383
    %415 = vmatpush1.bf16.msra.mxu0 %v382
    %416 = vmatprep.subr.bf16.mxu0 %v385
    %417 = vmatpush1.bf16.msra.mxu0 %v384
    %418 = vmatprep.subr.bf16.mxu0 %v387
    %419 = vmatpush1.bf16.msra.mxu0 %v386
    %420 = vmatprep.subr.bf16.mxu0 %v389
    %421 = vmatpush1.bf16.msra.mxu0 %v388
    %422 = vmatprep.subr.bf16.mxu0 %v391
    %423 = vmatpush1.bf16.msra.mxu0 %v390
    %424 = vmatprep.subr.bf16.mxu0 0
    %425 = vmatpush1.bf16.msra.mxu0 0
    %426 = vmatprep.subr.bf16.mxu0 0
    %427 = vmatpush1.bf16.msra.mxu0 0
    %428 = vmatprep.subr.bf16.mxu0 0
    %429 = vmatpush1.bf16.msra.mxu0 0
    %430 = vmatprep.subr.bf16.mxu0 0
    %431 = vmatpush1.bf16.msra.mxu0 0
    %432 = vmatprep.subr.bf16.mxu0 0
    %433 = vmatpush1.bf16.msra.mxu0 0
    %434 = vmatprep.subr.bf16.mxu0 0
    %435 = vmatpush1.bf16.msra.mxu0 0
    %436 = vmatprep.subr.bf16.mxu0 0
    %437 = vmatpush1.bf16.msra.mxu0 0
    %438 = vmatprep.subr.bf16.mxu0 0
    %439 = vmatpush1.bf16.msra.mxu0 0
    %440 = vmatprep.mubr.bf16.mxu0 0
    %441 = vmatmul.mubr.bf16.gmra.mrb[0].mxu0 %v264
    %v442 = vpop.f32.mrb[0].mxu0
    %v443 = vadd.f32 %v129, %v442
    %v444 = vpop.f32.mrb[0].mxu0
    %v445 = vadd.f32 %v133, %v444
    %v446 = vpop.f32.mrb[0].mxu0
    %v447 = vadd.f32 %v129, %v446
    %v448 = vpop.f32.mrb[0].mxu0
    %v449 = vadd.f32 %v133, %v448
    %450 = vmatprep.mubr.bf16.mxu0 0
    %451 = vmatmul.mubr.bf16.gmra.mrb[0].mxu0 %v265
    %v452 = vpop.f32.mrb[0].mxu0
    %v453 = vadd.f32 %v129, %v452
    %v454 = vpop.f32.mrb[0].mxu0
    %v455 = vadd.f32 %v133, %v454
    %v456 = vpop.f32.mrb[0].mxu0
    %v457 = vadd.f32 %v129, %v456
    %v458 = vpop.f32.mrb[0].mxu0
    %v459 = vadd.f32 %v133, %v458
    %460 = vmatprep.mubr.bf16.mxu0 0
    %461 = vmatmul.mubr.bf16.gmra.mrb[0].mxu0 %v266
    %v462 = vpop.f32.mrb[0].mxu0
    %v463 = vadd.f32 %v129, %v462
    %v464 = vpop.f32.mrb[0].mxu0
    %v465 = vadd.f32 %v133, %v464
    %v466 = vpop.f32.mrb[0].mxu0
    %v467 = vadd.f32 %v129, %v466
    %v468 = vpop.f32.mrb[0].mxu0
    %v469 = vadd.f32 %v133, %v468
    %470 = vmatprep.mubr.bf16.mxu0 0
    %471 = vmatmul.mubr.bf16.gmra.mrb[0].mxu0 %v267
    %v472 = vpop.f32.mrb[0].mxu0
    %v473 = vadd.f32 %v129, %v472
    %v474 = vpop.f32.mrb[0].mxu0
    %v475 = vadd.f32 %v133, %v474
    %v476 = vpop.f32.mrb[0].mxu0
    %v477 = vadd.f32 %v129, %v476
    %v478 = vpop.f32.mrb[0].mxu0
    %v479 = vadd.f32 %v133, %v478
    %480 = vmatprep.mubr.bf16.mxu0 0
    %481 = vmatmul.mubr.bf16.gmra.mrb[0].mxu0 %v268
    %v482 = vpop.f32.mrb[0].mxu0
    %v483 = vadd.f32 %v129, %v482
    %v484 = vpop.f32.mrb[0].mxu0
    %v485 = vadd.f32 %v133, %v484
    %v486 = vpop.f32.mrb[0].mxu0
    %v487 = vadd.f32 %v129, %v486
    %v488 = vpop.f32.mrb[0].mxu0
    %v489 = vadd.f32 %v133, %v488
    %490 = vmatprep.mubr.bf16.mxu0 0
    %491 = vmatmul.mubr.bf16.gmra.mrb[0].mxu0 %v269
    %v492 = vpop.f32.mrb[0].mxu0
    %v493 = vadd.f32 %v129, %v492
    %v494 = vpop.f32.mrb[0].mxu0
    %v495 = vadd.f32 %v133, %v494
    %v496 = vpop.f32.mrb[0].mxu0
    %v497 = vadd.f32 %v129, %v496
    %v498 = vpop.f32.mrb[0].mxu0
    %v499 = vadd.f32 %v133, %v498
    %500 = vmatprep.mubr.bf16.mxu0 0
    %501 = vmatmul.mubr.bf16.gmra.mrb[0].mxu0 %v270
    %v502 = vpop.f32.mrb[0].mxu0
    %v503 = vadd.f32 %v129, %v502
    %v504 = vpop.f32.mrb[0].mxu0
    %v505 = vadd.f32 %v133, %v504
    %v506 = vpop.f32.mrb[0].mxu0
    %v507 = vadd.f32 %v129, %v506
    %v508 = vpop.f32.mrb[0].mxu0
    %v509 = vadd.f32 %v133, %v508
    %510 = vmatprep.mubr.bf16.mxu0 0
    %511 = vmatmul.mubr.bf16.gmra.mrb[0].mxu0 %v271
    %v512 = vpop.f32.mrb[0].mxu0
    %v513 = vadd.f32 %v129, %v512
    %v514 = vpop.f32.mrb[0].mxu0
    %v515 = vadd.f32 %v133, %v514
    %v516 = vpop.f32.mrb[0].mxu0
    %v517 = vadd.f32 %v129, %v516
    %v518 = vpop.f32.mrb[0].mxu0
    %v519 = vadd.f32 %v133, %v518
    %520 = vmatprep.mubr.bf16.mxu0 0
    %521 = vmatmul.mubr.bf16.gmra.mrb[0].mxu0 %v272
    %v522 = vpop.f32.mrb[0].mxu0
    %v523 = vadd.f32 %v129, %v522
    %v524 = vpop.f32.mrb[0].mxu0
    %v525 = vadd.f32 %v133, %v524
    %v526 = vpop.f32.mrb[0].mxu0
    %v527 = vadd.f32 %v129, %v526
    %v528 = vpop.f32.mrb[0].mxu0
    %v529 = vadd.f32 %v133, %v528
    %530 = vmatprep.mubr.bf16.mxu0 0
    %531 = vmatmul.mubr.bf16.gmra.mrb[0].mxu0 %v273
    %v532 = vpop.f32.mrb[0].mxu0
    %v533 = vadd.f32 %v129, %v532
    %v534 = vpop.f32.mrb[0].mxu0
    %v535 = vadd.f32 %v133, %v534
    %v536 = vpop.f32.mrb[0].mxu0
    %v537 = vadd.f32 %v129, %v536
    %v538 = vpop.f32.mrb[0].mxu0
    %v539 = vadd.f32 %v133, %v538
    %540 = vmatprep.mubr.bf16.mxu0 0
    %541 = vmatmul.mubr.bf16.gmra.mrb[0].mxu0 %v274
    %v542 = vpop.f32.mrb[0].mxu0
    %v543 = vadd.f32 %v129, %v542
    %v544 = vpop.f32.mrb[0].mxu0
    %v545 = vadd.f32 %v133, %v544
    %v546 = vpop.f32.mrb[0].mxu0
    %v547 = vadd.f32 %v129, %v546
    %v548 = vpop.f32.mrb[0].mxu0
    %v549 = vadd.f32 %v133, %v548
    %550 = vmatprep.mubr.bf16.mxu0 0
    %551 = vmatmul.mubr.bf16.gmra.mrb[0].mxu0 %v275
    %v552 = vpop.f32.mrb[0].mxu0
    %v553 = vadd.f32 %v129, %v552
    %v554 = vpop.f32.mrb[0].mxu0
    %v555 = vadd.f32 %v133, %v554
    %v556 = vpop.f32.mrb[0].mxu0
    %v557 = vadd.f32 %v129, %v556
    %v558 = vpop.f32.mrb[0].mxu0
    %v559 = vadd.f32 %v133, %v558
    %560 = vmatprep.mubr.bf16.mxu0 0
    %561 = vmatmul.mubr.bf16.gmra.mrb[0].mxu0 %v276
    %v562 = vpop.f32.mrb[0].mxu0
    %v563 = vadd.f32 %v129, %v562
    %v564 = vpop.f32.mrb[0].mxu0
    %v565 = vadd.f32 %v133, %v564
    %v566 = vpop.f32.mrb[0].mxu0
    %v567 = vadd.f32 %v129, %v566
    %v568 = vpop.f32.mrb[0].mxu0
    %v569 = vadd.f32 %v133, %v568
    %570 = vmatprep.mubr.bf16.mxu0 0
    %571 = vmatmul.mubr.bf16.gmra.mrb[0].mxu0 %v277
    %v572 = vpop.f32.mrb[0].mxu0
    %v573 = vadd.f32 %v129, %v572
    %v574 = vpop.f32.mrb[0].mxu0
    %v575 = vadd.f32 %v133, %v574
    %v576 = vpop.f32.mrb[0].mxu0
    %v577 = vadd.f32 %v129, %v576
    %v578 = vpop.f32.mrb[0].mxu0
    %v579 = vadd.f32 %v133, %v578
    %580 = vmatprep.mubr.bf16.mxu0 0
    %581 = vmatmul.mubr.bf16.gmra.mrb[0].mxu0 %v278
    %v582 = vpop.f32.mrb[0].mxu0
    %v583 = vadd.f32 %v129, %v582
    %v584 = vpop.f32.mrb[0].mxu0
    %v585 = vadd.f32 %v133, %v584
    %v586 = vpop.f32.mrb[0].mxu0
    %v587 = vadd.f32 %v129, %v586
    %v588 = vpop.f32.mrb[0].mxu0
    %v589 = vadd.f32 %v133, %v588
    %590 = vmatprep.mubr.bf16.mxu0 0
    %591 = vmatmul.mubr.bf16.gmra.mrb[0].mxu0 %v279
    %v592 = vpop.f32.mrb[0].mxu0
    %v593 = vadd.f32 %v129, %v592
    %v594 = vpop.f32.mrb[0].mxu0
    %v595 = vadd.f32 %v133, %v594
    %v596 = vpop.f32.mrb[0].mxu0
    %v597 = vadd.f32 %v129, %v596
    %v598 = vpop.f32.mrb[0].mxu0
    %v599 = vadd.f32 %v133, %v598
    %600 = vmatprep.mubr.bf16.mxu0 0
    %601 = vmatmul.mubr.bf16.gmra.mrb[0].mxu0 %v280
    %v602 = vpop.f32.mrb[0].mxu0
    %v603 = vadd.f32 %v129, %v602
    %v604 = vpop.f32.mrb[0].mxu0
    %v605 = vadd.f32 %v133, %v604
    %v606 = vpop.f32.mrb[0].mxu0
    %v607 = vadd.f32 %v129, %v606
    %v608 = vpop.f32.mrb[0].mxu0
    %v609 = vadd.f32 %v133, %v608
    %610 = vmatprep.mubr.bf16.mxu0 0
    %611 = vmatmul.mubr.bf16.gmra.mrb[0].mxu0 %v281
    %v612 = vpop.f32.mrb[0].mxu0
    %v613 = vadd.f32 %v129, %v612
    %v614 = vpop.f32.mrb[0].mxu0
    %v615 = vadd.f32 %v133, %v614
    %v616 = vpop.f32.mrb[0].mxu0
    %v617 = vadd.f32 %v129, %v616
    %v618 = vpop.f32.mrb[0].mxu0
    %v619 = vadd.f32 %v133, %v618
    %620 = vmatprep.mubr.bf16.mxu0 0
    %621 = vmatmul.mubr.bf16.gmra.mrb[0].mxu0 %v282
    %v622 = vpop.f32.mrb[0].mxu0
    %v623 = vadd.f32 %v129, %v622
    %v624 = vpop.f32.mrb[0].mxu0
    %v625 = vadd.f32 %v133, %v624
    %v626 = vpop.f32.mrb[0].mxu0
    %v627 = vadd.f32 %v129, %v626
    %v628 = vpop.f32.mrb[0].mxu0
    %v629 = vadd.f32 %v133, %v628
    %630 = vmatprep.mubr.bf16.mxu0 0
    %631 = vmatmul.mubr.bf16.gmra.mrb[0].mxu0 %v283
    %v632 = vpop.f32.mrb[0].mxu0
    %v633 = vadd.f32 %v129, %v632
    %v634 = vpop.f32.mrb[0].mxu0
    %v635 = vadd.f32 %v133, %v634
    %v636 = vpop.f32.mrb[0].mxu0
    %v637 = vadd.f32 %v129, %v636
    %v638 = vpop.f32.mrb[0].mxu0
    %v639 = vadd.f32 %v133, %v638
    %640 = vmatprep.mubr.bf16.mxu0 0
    %641 = vmatmul.mubr.bf16.gmra.mrb[0].mxu0 %v284
    %v642 = vpop.f32.mrb[0].mxu0
    %v643 = vadd.f32 %v129, %v642
    %v644 = vpop.f32.mrb[0].mxu0
    %v645 = vadd.f32 %v133, %v644
    %v646 = vpop.f32.mrb[0].mxu0
    %v647 = vadd.f32 %v129, %v646
    %v648 = vpop.f32.mrb[0].mxu0
    %v649 = vadd.f32 %v133, %v648
    %650 = vmatprep.mubr.bf16.mxu0 0
    %651 = vmatmul.mubr.bf16.gmra.mrb[0].mxu0 %v285
    %v652 = vpop.f32.mrb[0].mxu0
    %v653 = vadd.f32 %v129, %v652
    %v654 = vpop.f32.mrb[0].mxu0
    %v655 = vadd.f32 %v133, %v654
    %v656 = vpop.f32.mrb[0].mxu0
    %v657 = vadd.f32 %v129, %v656
    %v658 = vpop.f32.mrb[0].mxu0
    %v659 = vadd.f32 %v133, %v658
    %660 = vmatprep.mubr.bf16.mxu0 0
    %661 = vmatmul.mubr.bf16.gmra.mrb[0].mxu0 %v286
    %v662 = vpop.f32.mrb[0].mxu0
    %v663 = vadd.f32 %v129, %v662
    %v664 = vpop.f32.mrb[0].mxu0
    %v665 = vadd.f32 %v133, %v664
    %v666 = vpop.f32.mrb[0].mxu0
    %v667 = vadd.f32 %v129, %v666
    %v668 = vpop.f32.mrb[0].mxu0
    %v669 = vadd.f32 %v133, %v668
    %670 = vmatprep.mubr.bf16.mxu0 0
    %671 = vmatmul.mubr.bf16.gmra.mrb[0].mxu0 %v287
    %v672 = vpop.f32.mrb[0].mxu0
    %v673 = vadd.f32 %v129, %v672
    %v674 = vpop.f32.mrb[0].mxu0
    %v675 = vadd.f32 %v133, %v674
    %v676 = vpop.f32.mrb[0].mxu0
    %v677 = vadd.f32 %v129, %v676
    %v678 = vpop.f32.mrb[0].mxu0
    %v679 = vadd.f32 %v133, %v678
    %680 = vmatprep.mubr.bf16.mxu0 0
    %681 = vmatmul.mubr.bf16.gmra.mrb[0].mxu0 %v288
    %v682 = vpop.f32.mrb[0].mxu0
    %v683 = vadd.f32 %v129, %v682
    %v684 = vpop.f32.mrb[0].mxu0
    %v685 = vadd.f32 %v133, %v684
    %v686 = vpop.f32.mrb[0].mxu0
    %v687 = vadd.f32 %v129, %v686
    %v688 = vpop.f32.mrb[0].mxu0
    %v689 = vadd.f32 %v133, %v688
    %690 = vmatprep.mubr.bf16.mxu0 0
    %691 = vmatmul.mubr.bf16.gmra.mrb[0].mxu0 %v289
    %v692 = vpop.f32.mrb[0].mxu0
    %v693 = vadd.f32 %v129, %v692
    %v694 = vpop.f32.mrb[0].mxu0
    %v695 = vadd.f32 %v133, %v694
    %v696 = vpop.f32.mrb[0].mxu0
    %v697 = vadd.f32 %v129, %v696
    %v698 = vpop.f32.mrb[0].mxu0
    %v699 = vadd.f32 %v133, %v698
    %700 = vmatprep.mubr.bf16.mxu0 0
    %701 = vmatmul.mubr.bf16.gmra.mrb[0].mxu0 %v290
    %v702 = vpop.f32.mrb[0].mxu0
    %v703 = vadd.f32 %v129, %v702
    %v704 = vpop.f32.mrb[0].mxu0
    %v705 = vadd.f32 %v133, %v704
    %v706 = vpop.f32.mrb[0].mxu0
    %v707 = vadd.f32 %v129, %v706
    %v708 = vpop.f32.mrb[0].mxu0
    %v709 = vadd.f32 %v133, %v708
    %710 = vmatprep.mubr.bf16.mxu0 0
    %711 = vmatmul.mubr.bf16.gmra.mrb[0].mxu0 %v291
    %v712 = vpop.f32.mrb[0].mxu0
    %v713 = vadd.f32 %v129, %v712
    %v714 = vpop.f32.mrb[0].mxu0
    %v715 = vadd.f32 %v133, %v714
    %v716 = vpop.f32.mrb[0].mxu0
    %v717 = vadd.f32 %v129, %v716
    %v718 = vpop.f32.mrb[0].mxu0
    %v719 = vadd.f32 %v133, %v718
    %720 = vmatprep.mubr.bf16.mxu0 0
    %721 = vmatmul.mubr.bf16.gmra.mrb[0].mxu0 %v292
    %v722 = vpop.f32.mrb[0].mxu0
    %v723 = vadd.f32 %v129, %v722
    %v724 = vpop.f32.mrb[0].mxu0
    %v725 = vadd.f32 %v133, %v724
    %v726 = vpop.f32.mrb[0].mxu0
    %v727 = vadd.f32 %v129, %v726
    %v728 = vpop.f32.mrb[0].mxu0
    %v729 = vadd.f32 %v133, %v728
    %730 = vmatprep.mubr.bf16.mxu0 0
    %731 = vmatmul.mubr.bf16.gmra.mrb[0].mxu0 %v293
    %v732 = vpop.f32.mrb[0].mxu0
    %v733 = vadd.f32 %v129, %v732
    %v734 = vpop.f32.mrb[0].mxu0
    %v735 = vadd.f32 %v133, %v734
    %v736 = vpop.f32.mrb[0].mxu0
    %v737 = vadd.f32 %v129, %v736
    %v738 = vpop.f32.mrb[0].mxu0
    %v739 = vadd.f32 %v133, %v738
    %740 = vmatprep.mubr.bf16.mxu0 0
    %741 = vmatmul.mubr.bf16.gmra.mrb[0].mxu0 %v294
    %v742 = vpop.f32.mrb[0].mxu0
    %v743 = vadd.f32 %v129, %v742
    %v744 = vpop.f32.mrb[0].mxu0
    %v745 = vadd.f32 %v133, %v744
    %v746 = vpop.f32.mrb[0].mxu0
    %v747 = vadd.f32 %v129, %v746
    %v748 = vpop.f32.mrb[0].mxu0
    %v749 = vadd.f32 %v133, %v748
    %750 = vmatprep.mubr.bf16.mxu0 0
    %751 = vmatmul.mubr.bf16.gmra.mrb[0].mxu0 %v295
    %v752 = vpop.f32.mrb[0].mxu0
    %v753 = vadd.f32 %v129, %v752
    %v754 = vpop.f32.mrb[0].mxu0
    %v755 = vadd.f32 %v133, %v754
    %v756 = vpop.f32.mrb[0].mxu0
    %v757 = vadd.f32 %v129, %v756
    %v758 = vpop.f32.mrb[0].mxu0
    %v759 = vadd.f32 %v133, %v758
    %760 = vdwg.mxu0
    %v761 = vpack.c.bf16 %v447, %v443
    %v762 = vpack.c.bf16 %v449, %v445
    %v763 = vpack.c.bf16 %v457, %v453
    %v764 = vpack.c.bf16 %v459, %v455
    %v765 = vpack.c.bf16 %v467, %v463
    %v766 = vpack.c.bf16 %v469, %v465
    %v767 = vpack.c.bf16 %v477, %v473
    %v768 = vpack.c.bf16 %v479, %v475
    %v769 = vpack.c.bf16 %v487, %v483
    %v770 = vpack.c.bf16 %v489, %v485
    %v771 = vpack.c.bf16 %v497, %v493
    %v772 = vpack.c.bf16 %v499, %v495
    %v773 = vpack.c.bf16 %v507, %v503
    %v774 = vpack.c.bf16 %v509, %v505
    %v775 = vpack.c.bf16 %v517, %v513
    %v776 = vpack.c.bf16 %v519, %v515
    %v777 = vpack.c.bf16 %v527, %v523
    %v778 = vpack.c.bf16 %v529, %v525
    %v779 = vpack.c.bf16 %v537, %v533
    %v780 = vpack.c.bf16 %v539, %v535
    %v781 = vpack.c.bf16 %v547, %v543
    %v782 = vpack.c.bf16 %v549, %v545
    %v783 = vpack.c.bf16 %v557, %v553
    %v784 = vpack.c.bf16 %v559, %v555
    %v785 = vpack.c.bf16 %v567, %v563
    %v786 = vpack.c.bf16 %v569, %v565
    %v787 = vpack.c.bf16 %v577, %v573
    %v788 = vpack.c.bf16 %v579, %v575
    %v789 = vpack.c.bf16 %v587, %v583
    %v790 = vpack.c.bf16 %v589, %v585
    %v791 = vpack.c.bf16 %v597, %v593
    %v792 = vpack.c.bf16 %v599, %v595
    %v793 = vpack.c.bf16 %v607, %v603
    %v794 = vpack.c.bf16 %v609, %v605
    %v795 = vpack.c.bf16 %v617, %v613
    %v796 = vpack.c.bf16 %v619, %v615
    %v797 = vpack.c.bf16 %v627, %v623
    %v798 = vpack.c.bf16 %v629, %v625
    %v799 = vpack.c.bf16 %v637, %v633
    %v800 = vpack.c.bf16 %v639, %v635
    %v801 = vpack.c.bf16 %v647, %v643
    %v802 = vpack.c.bf16 %v649, %v645
    %v803 = vpack.c.bf16 %v657, %v653
    %v804 = vpack.c.bf16 %v659, %v655
    %v805 = vpack.c.bf16 %v667, %v663
    %v806 = vpack.c.bf16 %v669, %v665
    %v807 = vpack.c.bf16 %v677, %v673
    %v808 = vpack.c.bf16 %v679, %v675
    %v809 = vpack.c.bf16 %v687, %v683
    %v810 = vpack.c.bf16 %v689, %v685
    %v811 = vpack.c.bf16 %v697, %v693
    %v812 = vpack.c.bf16 %v699, %v695
    %v813 = vpack.c.bf16 %v707, %v703
    %v814 = vpack.c.bf16 %v709, %v705
    %v815 = vpack.c.bf16 %v717, %v713
    %v816 = vpack.c.bf16 %v719, %v715
    %v817 = vpack.c.bf16 %v727, %v723
    %v818 = vpack.c.bf16 %v729, %v725
    %v819 = vpack.c.bf16 %v737, %v733
    %v820 = vpack.c.bf16 %v739, %v735
    %v821 = vpack.c.bf16 %v747, %v743
    %v822 = vpack.c.bf16 %v749, %v745
    %v823 = vpack.c.bf16 %v757, %v753
    %v824 = vpack.c.bf16 %v759, %v755
    %v889 = vunpack.c.l.b16 %v761
    %v890 = vunpack.c.l.b16 %v762
    %v891 = vunpack.c.h.b16 %v761
    %v892 = vunpack.c.h.b16 %v762
    %v893 = vunpack.c.l.b16 %v763
    %v894 = vunpack.c.l.b16 %v764
    %v895 = vunpack.c.h.b16 %v763
    %v896 = vunpack.c.h.b16 %v764
    %v897 = vunpack.c.l.b16 %v765
    %v898 = vunpack.c.l.b16 %v766
    %v899 = vunpack.c.h.b16 %v765
    %v900 = vunpack.c.h.b16 %v766
    %v901 = vunpack.c.l.b16 %v767
    %v902 = vunpack.c.l.b16 %v768
    %v903 = vunpack.c.h.b16 %v767
    %v904 = vunpack.c.h.b16 %v768
    %v905 = vunpack.c.l.b16 %v769
    %v906 = vunpack.c.l.b16 %v770
    %v907 = vunpack.c.h.b16 %v769
    %v908 = vunpack.c.h.b16 %v770
    %v909 = vunpack.c.l.b16 %v771
    %v910 = vunpack.c.l.b16 %v772
    %v911 = vunpack.c.h.b16 %v771
    %v912 = vunpack.c.h.b16 %v772
    %v913 = vunpack.c.l.b16 %v773
    %v914 = vunpack.c.l.b16 %v774
    %v915 = vunpack.c.h.b16 %v773
    %v916 = vunpack.c.h.b16 %v774
    %v917 = vunpack.c.l.b16 %v775
    %v918 = vunpack.c.l.b16 %v776
    %v919 = vunpack.c.h.b16 %v775
    %v920 = vunpack.c.h.b16 %v776
    %v921 = vunpack.c.l.b16 %v777
    %v922 = vunpack.c.l.b16 %v778
    %v923 = vunpack.c.h.b16 %v777
    %v924 = vunpack.c.h.b16 %v778
    %v925 = vunpack.c.l.b16 %v779
    %v926 = vunpack.c.l.b16 %v780
    %v927 = vunpack.c.h.b16 %v779
    %v928 = vunpack.c.h.b16 %v780
    %v929 = vunpack.c.l.b16 %v781
    %v930 = vunpack.c.l.b16 %v782
    %v931 = vunpack.c.h.b16 %v781
    %v932 = vunpack.c.h.b16 %v782
    %v933 = vunpack.c.l.b16 %v783
    %v934 = vunpack.c.l.b16 %v784
    %v935 = vunpack.c.h.b16 %v783
    %v936 = vunpack.c.h.b16 %v784
    %v937 = vunpack.c.l.b16 %v785
    %v938 = vunpack.c.l.b16 %v786
    %v939 = vunpack.c.h.b16 %v785
    %v940 = vunpack.c.h.b16 %v786
    %v941 = vunpack.c.l.b16 %v787
    %v942 = vunpack.c.l.b16 %v788
    %v943 = vunpack.c.h.b16 %v787
    %v944 = vunpack.c.h.b16 %v788
    %v945 = vunpack.c.l.b16 %v789
    %v946 = vunpack.c.l.b16 %v790
    %v947 = vunpack.c.h.b16 %v789
    %v948 = vunpack.c.h.b16 %v790
    %v949 = vunpack.c.l.b16 %v791
    %v950 = vunpack.c.l.b16 %v792
    %v951 = vunpack.c.h.b16 %v791
    %v952 = vunpack.c.h.b16 %v792
    %v953 = vunpack.c.l.b16 %v793
    %v954 = vunpack.c.l.b16 %v794
    %v955 = vunpack.c.h.b16 %v793
    %v956 = vunpack.c.h.b16 %v794
    %v957 = vunpack.c.l.b16 %v795
    %v958 = vunpack.c.l.b16 %v796
    %v959 = vunpack.c.h.b16 %v795
    %v960 = vunpack.c.h.b16 %v796
    %v961 = vunpack.c.l.b16 %v797
    %v962 = vunpack.c.l.b16 %v798
    %v963 = vunpack.c.h.b16 %v797
    %v964 = vunpack.c.h.b16 %v798
    %v965 = vunpack.c.l.b16 %v799
    %v966 = vunpack.c.l.b16 %v800
    %v967 = vunpack.c.h.b16 %v799
    %v968 = vunpack.c.h.b16 %v800
    %v969 = vunpack.c.l.b16 %v801
    %v970 = vunpack.c.l.b16 %v802
    %v971 = vunpack.c.h.b16 %v801
    %v972 = vunpack.c.h.b16 %v802
    %v973 = vunpack.c.l.b16 %v803
    %v974 = vunpack.c.l.b16 %v804
    %v975 = vunpack.c.h.b16 %v803
    %v976 = vunpack.c.h.b16 %v804
    %v977 = vunpack.c.l.b16 %v805
    %v978 = vunpack.c.l.b16 %v806
    %v979 = vunpack.c.h.b16 %v805
    %v980 = vunpack.c.h.b16 %v806
    %v981 = vunpack.c.l.b16 %v807
    %v982 = vunpack.c.l.b16 %v808
    %v983 = vunpack.c.h.b16 %v807
    %v984 = vunpack.c.h.b16 %v808
    %v985 = vunpack.c.l.b16 %v809
    %v986 = vunpack.c.l.b16 %v810
    %v987 = vunpack.c.h.b16 %v809
    %v988 = vunpack.c.h.b16 %v810
    %v989 = vunpack.c.l.b16 %v811
    %v990 = vunpack.c.l.b16 %v812
    %v991 = vunpack.c.h.b16 %v811
    %v992 = vunpack.c.h.b16 %v812
    %v993 = vunpack.c.l.b16 %v813
    %v994 = vunpack.c.l.b16 %v814
    %v995 = vunpack.c.h.b16 %v813
    %v996 = vunpack.c.h.b16 %v814
    %v997 = vunpack.c.l.b16 %v815
    %v998 = vunpack.c.l.b16 %v816
    %v999 = vunpack.c.h.b16 %v815
    %v1000 = vunpack.c.h.b16 %v816
    %v1001 = vunpack.c.l.b16 %v817
    %v1002 = vunpack.c.l.b16 %v818
    %v1003 = vunpack.c.h.b16 %v817
    %v1004 = vunpack.c.h.b16 %v818
    %v1005 = vunpack.c.l.b16 %v819
    %v1006 = vunpack.c.l.b16 %v820
    %v1007 = vunpack.c.h.b16 %v819
    %v1008 = vunpack.c.h.b16 %v820
    %v1009 = vunpack.c.l.b16 %v821
    %v1010 = vunpack.c.l.b16 %v822
    %v1011 = vunpack.c.h.b16 %v821
    %v1012 = vunpack.c.h.b16 %v822
    %v1013 = vunpack.c.l.b16 %v823
    %v1014 = vunpack.c.l.b16 %v824
    %v1015 = vunpack.c.h.b16 %v823
    %v1016 = vunpack.c.h.b16 %v824
    %v1017 = vpack.c.b16 %v890, %v889
    %v1018 = vpack.c.b16 %v892, %v891
    %v1019 = vpack.c.b16 %v894, %v893
    %v1020 = vpack.c.b16 %v896, %v895
    %v1021 = vpack.c.b16 %v898, %v897
    %v1022 = vpack.c.b16 %v900, %v899
    %v1023 = vpack.c.b16 %v902, %v901
    %v1024 = vpack.c.b16 %v904, %v903
    %v1025 = vpack.c.b16 %v906, %v905
    %v1026 = vpack.c.b16 %v908, %v907
    %v1027 = vpack.c.b16 %v910, %v909
    %v1028 = vpack.c.b16 %v912, %v911
    %v1029 = vpack.c.b16 %v914, %v913
    %v1030 = vpack.c.b16 %v916, %v915
    %v1031 = vpack.c.b16 %v918, %v917
    %v1032 = vpack.c.b16 %v920, %v919
    %v1033 = vpack.c.b16 %v922, %v921
    %v1034 = vpack.c.b16 %v924, %v923
    %v1035 = vpack.c.b16 %v926, %v925
    %v1036 = vpack.c.b16 %v928, %v927
    %v1037 = vpack.c.b16 %v930, %v929
    %v1038 = vpack.c.b16 %v932, %v931
    %v1039 = vpack.c.b16 %v934, %v933
    %v1040 = vpack.c.b16 %v936, %v935
    %v1041 = vpack.c.b16 %v938, %v937
    %v1042 = vpack.c.b16 %v940, %v939
    %v1043 = vpack.c.b16 %v942, %v941
    %v1044 = vpack.c.b16 %v944, %v943
    %v1045 = vpack.c.b16 %v946, %v945
    %v1046 = vpack.c.b16 %v948, %v947
    %v1047 = vpack.c.b16 %v950, %v949
    %v1048 = vpack.c.b16 %v952, %v951
    %v1049 = vpack.c.b16 %v954, %v953
    %v1050 = vpack.c.b16 %v956, %v955
    %v1051 = vpack.c.b16 %v958, %v957
    %v1052 = vpack.c.b16 %v960, %v959
    %v1053 = vpack.c.b16 %v962, %v961
    %v1054 = vpack.c.b16 %v964, %v963
    %v1055 = vpack.c.b16 %v966, %v965
    %v1056 = vpack.c.b16 %v968, %v967
    %v1057 = vpack.c.b16 %v970, %v969
    %v1058 = vpack.c.b16 %v972, %v971
    %v1059 = vpack.c.b16 %v974, %v973
    %v1060 = vpack.c.b16 %v976, %v975
    %v1061 = vpack.c.b16 %v978, %v977
    %v1062 = vpack.c.b16 %v980, %v979
    %v1063 = vpack.c.b16 %v982, %v981
    %v1064 = vpack.c.b16 %v984, %v983
    %v1065 = vpack.c.b16 %v986, %v985
    %v1066 = vpack.c.b16 %v988, %v987
    %v1067 = vpack.c.b16 %v990, %v989
    %v1068 = vpack.c.b16 %v992, %v991
    %v1069 = vpack.c.b16 %v994, %v993
    %v1070 = vpack.c.b16 %v996, %v995
    %v1071 = vpack.c.b16 %v998, %v997
    %v1072 = vpack.c.b16 %v1000, %v999
    %v1073 = vpack.c.b16 %v1002, %v1001
    %v1074 = vpack.c.b16 %v1004, %v1003
    %v1075 = vpack.c.b16 %v1006, %v1005
    %v1076 = vpack.c.b16 %v1008, %v1007
    %v1077 = vpack.c.b16 %v1010, %v1009
    %v1078 = vpack.c.b16 %v1012, %v1011
    %v1079 = vpack.c.b16 %v1014, %v1013
    %v1080 = vpack.c.b16 %v1016, %v1015
    %1145 = vst [vmem:[#allocation7] sm:$0xff] %v1017
    %1146 = vst [vmem:[#allocation7 + $0x8] sm:$0xff] %v1018
    %1147 = vst [vmem:[#allocation7 + $0x10] sm:$0xff] %v1019
    %1148 = vst [vmem:[#allocation7 + $0x18] sm:$0xff] %v1020
    %1149 = vst [vmem:[#allocation7 + $0x20] sm:$0xff] %v1021
    %1150 = vst [vmem:[#allocation7 + $0x28] sm:$0xff] %v1022
    %1151 = vst [vmem:[#allocation7 + $0x30] sm:$0xff] %v1023
    %1152 = vst [vmem:[#allocation7 + $0x38] sm:$0xff] %v1024
    %1153 = vst [vmem:[#allocation7 + $0x40] sm:$0xff] %v1025
    %1154 = vst [vmem:[#allocation7 + $0x48] sm:$0xff] %v1026
    %1155 = vst [vmem:[#allocation7 + $0x50] sm:$0xff] %v1027
    %1156 = vst [vmem:[#allocation7 + $0x58] sm:$0xff] %v1028
    %1157 = vst [vmem:[#allocation7 + $0x60] sm:$0xff] %v1029
    %1158 = vst [vmem:[#allocation7 + $0x68] sm:$0xff] %v1030
    %1159 = vst [vmem:[#allocation7 + $0x70] sm:$0xff] %v1031
    %1160 = vst [vmem:[#allocation7 + $0x78] sm:$0xff] %v1032
    %1161 = vst [vmem:[#allocation7 + $0x80] sm:$0xff] %v1033
    %1162 = vst [vmem:[#allocation7 + $0x88] sm:$0xff] %v1034
    %1163 = vst [vmem:[#allocation7 + $0x90] sm:$0xff] %v1035
    %1164 = vst [vmem:[#allocation7 + $0x98] sm:$0xff] %v1036
    %1165 = vst [vmem:[#allocation7 + $0xa0] sm:$0xff] %v1037
    %1166 = vst [vmem:[#allocation7 + $0xa8] sm:$0xff] %v1038
    %1167 = vst [vmem:[#allocation7 + $0xb0] sm:$0xff] %v1039
    %1168 = vst [vmem:[#allocation7 + $0xb8] sm:$0xff] %v1040
    %1169 = vst [vmem:[#allocation7 + $0xc0] sm:$0xff] %v1041
    %1170 = vst [vmem:[#allocation7 + $0xc8] sm:$0xff] %v1042
    %1171 = vst [vmem:[#allocation7 + $0xd0] sm:$0xff] %v1043
    %1172 = vst [vmem:[#allocation7 + $0xd8] sm:$0xff] %v1044
    %1173 = vst [vmem:[#allocation7 + $0xe0] sm:$0xff] %v1045
    %1174 = vst [vmem:[#allocation7 + $0xe8] sm:$0xff] %v1046
    %1175 = vst [vmem:[#allocation7 + $0xf0] sm:$0xff] %v1047
    %1176 = vst [vmem:[#allocation7 + $0xf8] sm:$0xff] %v1048
    %1177 = vst [vmem:[#allocation7 + $0x100] sm:$0xff] %v1049
    %1178 = vst [vmem:[#allocation7 + $0x108] sm:$0xff] %v1050
    %1179 = vst [vmem:[#allocation7 + $0x110] sm:$0xff] %v1051
    %1180 = vst [vmem:[#allocation7 + $0x118] sm:$0xff] %v1052
    %1181 = vst [vmem:[#allocation7 + $0x120] sm:$0xff] %v1053
    %1182 = vst [vmem:[#allocation7 + $0x128] sm:$0xff] %v1054
    %1183 = vst [vmem:[#allocation7 + $0x130] sm:$0xff] %v1055
    %1184 = vst [vmem:[#allocation7 + $0x138] sm:$0xff] %v1056
    %1185 = vst [vmem:[#allocation7 + $0x140] sm:$0xff] %v1057
    %1186 = vst [vmem:[#allocation7 + $0x148] sm:$0xff] %v1058
    %1187 = vst [vmem:[#allocation7 + $0x150] sm:$0xff] %v1059
    %1188 = vst [vmem:[#allocation7 + $0x158] sm:$0xff] %v1060
    %1189 = vst [vmem:[#allocation7 + $0x160] sm:$0xff] %v1061
    %1190 = vst [vmem:[#allocation7 + $0x168] sm:$0xff] %v1062
    %1191 = vst [vmem:[#allocation7 + $0x170] sm:$0xff] %v1063
    %1192 = vst [vmem:[#allocation7 + $0x178] sm:$0xff] %v1064
    %1193 = vst [vmem:[#allocation7 + $0x180] sm:$0xff] %v1065
    %1194 = vst [vmem:[#allocation7 + $0x188] sm:$0xff] %v1066
    %1195 = vst [vmem:[#allocation7 + $0x190] sm:$0xff] %v1067
    %1196 = vst [vmem:[#allocation7 + $0x198] sm:$0xff] %v1068
    %1197 = vst [vmem:[#allocation7 + $0x1a0] sm:$0xff] %v1069
    %1198 = vst [vmem:[#allocation7 + $0x1a8] sm:$0xff] %v1070
    %1199 = vst [vmem:[#allocation7 + $0x1b0] sm:$0xff] %v1071
    %1200 = vst [vmem:[#allocation7 + $0x1b8] sm:$0xff] %v1072
    %1201 = vst [vmem:[#allocation7 + $0x1c0] sm:$0xff] %v1073
    %1202 = vst [vmem:[#allocation7 + $0x1c8] sm:$0xff] %v1074
    %1203 = vst [vmem:[#allocation7 + $0x1d0] sm:$0xff] %v1075
    %1204 = vst [vmem:[#allocation7 + $0x1d8] sm:$0xff] %v1076
    %1205 = vst [vmem:[#allocation7 + $0x1e0] sm:$0xff] %v1077
    %1206 = vst [vmem:[#allocation7 + $0x1e8] sm:$0xff] %v1078
    %1207 = vst [vmem:[#allocation7 + $0x1f0] sm:$0xff] %v1079
    %1208 = vst [vmem:[#allocation7 + $0x1f8] sm:$0xff] %v1080
    // Predicated region
    $region22: #{tpu_custom_call.1} parent=1 // pred_check
      _
    $region23: #{tpu_custom_call.1} parent=1 // pred_check_branch
      %1210 = sbr.rel (0) target = $region25
    $region24: #{tpu_custom_call.1} parent=1 // pred_region
      %s1212 = ssub.s32 8192, 8192
      %1213 = vsyncadd [#allocation4], %s1212
      %s1214 = sshll.u32 [#allocation7], 4
      %s1215 = int_to_ptr.vmem [resolvable:$true] %s1214
      %1220 = dma.vmem_to_hbm [thread:$0]  %s1215, 8192, %s3, [#allocation4], 128, 128, 8
    $region25: #{tpu_custom_call.1} parent=1 // pred_fallthru
      _
    // Predicated region
    $region26: #{tpu_custom_call.1} parent=1 // pred_check
      _
    $region27: #{tpu_custom_call.1} parent=1 // pred_check_branch
      %1222 = sbr.rel (0) target = $region29
    $region28: #{tpu_custom_call.1} parent=1 // pred_region
      %1223 = dma.done [#allocation4], 8192
    $region29: #{tpu_custom_call.1} parent=1 // pred_fallthru
      _
    %1224 = vsyncpa [#allocation3], 1
    %1225 = vsyncpa [#allocation6], 1
    %1226 = vsyncpa [#allocation4], 1

</llo_original>
